<compile_context>
chip_gen: v7x
topology: tpu7x:2x2x1
jax: 0.10.0
libtpu: 0.0.40
codegen_flags: <defaults>
</compile_context>

<pallas_src>
import functools

import jax
import jax.numpy as jnp
from jax import lax
from jax.experimental import pallas as pl
from jax.experimental.pallas import tpu as pltpu

BETA = 0.95
THRESHOLD = 1.0

_VMEM_BUDGET_BYTES = 48 * 1024 * 1024  # stay under v7x's 64 MiB physical VMEM/TC


def _row_stream_bytes(block_b, F):
    # 6 f32 row streams (x, mem1, mem2 in; out, mem1', mem2' out), double-buffered.
    return 6 * 2 * block_b * F * 4


def _weight_bytes(F, compute_dtype):
    itemsize = jnp.dtype(compute_dtype).itemsize
    # two (F, F) weights + two (1, F) f32 biases, double-buffered by the pipeline.
    return 2 * (2 * F * F * itemsize + 2 * F * 4)


def _pick_block_b(B, F, row_budget_bytes):
    """Largest batch tile <= 512 rows that divides B, is sublane aligned, and
    keeps the double-buffered row streams within the VMEM budget."""
    for cand in (512, 256, 128, 64, 32, 16, 8):
        if cand <= B and B % cand == 0 and _row_stream_bytes(cand, F) <= row_budget_bytes:
            return cand
    return B  # tiny batch: single grid step, block == full array


def _spiking_residual_kernel(x_ref, w1_ref, b1_ref, w2_ref, b2_ref,
                             mem1_ref, mem2_ref,
                             out_ref, mem1_out_ref, mem2_out_ref,
                             *, compute_dtype):
    x = x_ref[...]                                  # (block_b, F) f32
    x_mm = x.astype(compute_dtype)

    # ---- layer 1: Linear (trans-B, PyTorch (out,in) weights) + Leaky LIF ----
    cur1 = lax.dot_general(
        x_mm, w1_ref[...],
        dimension_numbers=(((1,), (1,)), ((), ())),
        preferred_element_type=jnp.float32) + b1_ref[...]
    m1_prev = mem1_ref[...]
    m1 = BETA * m1_prev + cur1 - jnp.where(m1_prev > THRESHOLD, THRESHOLD, 0.0)
    spk1 = jnp.where(m1 > THRESHOLD, 1.0, 0.0)      # exactly {0, 1}

    # ---- layer 2: Linear + Leaky LIF ----
    cur2 = lax.dot_general(
        spk1.astype(compute_dtype), w2_ref[...],
        dimension_numbers=(((1,), (1,)), ((), ())),
        preferred_element_type=jnp.float32) + b2_ref[...]
    m2_prev = mem2_ref[...]
    m2 = BETA * m2_prev + cur2 - jnp.where(m2_prev > THRESHOLD, THRESHOLD, 0.0)
    spk2 = jnp.where(m2 > THRESHOLD, 1.0, 0.0)

    # ---- residual add + state outputs ----
    out_ref[...] = spk2 + x
    mem1_out_ref[...] = m1
    mem2_out_ref[...] = m2


@functools.partial(jax.jit, static_argnames=("block_b", "compute_dtype"))
def spiking_residual_block(x, w1, b1, w2, b2, mem1, mem2, *,
                           block_b=None, compute_dtype=jnp.float32):
    """x, mem*: (B, F) float32. w*: (F, F) in PyTorch (out, in) layout. b*: (F,).

    compute_dtype=jnp.bfloat16 runs both matmuls on the bf16 MXU path
    (recommended on v6e/v7x); accumulation stays f32 and the LIF / residual
    math stays f32.
    """
    B, F = x.shape
    assert F % 128 == 0, "features must be lane-aligned (multiple of 128)"

    w_bytes = _weight_bytes(F, compute_dtype)
    if block_b is None:
        block_b = _pick_block_b(B, F, _VMEM_BUDGET_BYTES - w_bytes)
    assert B % block_b == 0, "block_b must divide the batch"
    assert block_b % 8 == 0 or block_b == B, "block_b must be f32-sublane aligned"

    footprint = w_bytes + _row_stream_bytes(block_b, F)
    assert footprint <= _VMEM_BUDGET_BYTES, (
        f"VMEM footprint {footprint >> 20} MiB exceeds budget; lower block_b")
    vmem_limit = int(min(56 * 2**20, max(16 * 2**20, footprint + 8 * 2**20)))

    # Weights kept in (out, in) layout (no transpose pass); optional bf16 cast.
    w1_c = w1.astype(compute_dtype)
    w2_c = w2.astype(compute_dtype)
    b1_2d = b1.reshape(1, F).astype(jnp.float32)
    b2_2d = b2.reshape(1, F).astype(jnp.float32)

    row_spec = pl.BlockSpec((block_b, F), lambda i: (i, 0))
    # Constant index_map: block index never changes across the batch grid, so
    # the weights/biases are DMA'd into VMEM once and reused every step.
    weight_spec = pl.BlockSpec((F, F), lambda i: (0, 0))
    bias_spec = pl.BlockSpec((1, F), lambda i: (0, 0))

    kernel = functools.partial(_spiking_residual_kernel,
                               compute_dtype=compute_dtype)

    out, mem1_new, mem2_new = pl.pallas_call(
        kernel,
        out_shape=(
            jax.ShapeDtypeStruct((B, F), jnp.float32),
            jax.ShapeDtypeStruct((B, F), jnp.float32),
            jax.ShapeDtypeStruct((B, F), jnp.float32),
        ),
        grid_spec=pltpu.PrefetchScalarGridSpec(
            num_scalar_prefetch=0,
            grid=(B // block_b,),
            in_specs=[row_spec, weight_spec, bias_spec, weight_spec, bias_spec,
                      row_spec, row_spec],
            out_specs=[row_spec, row_spec, row_spec],
        ),
        # mem1 / mem2 are recurrent state: update them in place.
        input_output_aliases={5: 1, 6: 2},
        compiler_params=pltpu.CompilerParams(
            dimension_semantics=("parallel",),
            vmem_limit_bytes=vmem_limit,
        ),
    )(x, w1_c, b1_2d, w2_c, b2_2d, mem1, mem2)
    return out, mem1_new, mem2_new


def _reference(x, w1, b1, w2, b2, mem1, mem2):
    cur1 = x @ w1.T + b1
    rst1 = (mem1 > THRESHOLD).astype(jnp.float32)
    m1 = BETA * mem1 + cur1 - rst1 * THRESHOLD
    spk1 = (m1 > THRESHOLD).astype(jnp.float32)
    cur2 = spk1 @ w2.T + b2
    rst2 = (mem2 > THRESHOLD).astype(jnp.float32)
    m2 = BETA * mem2 + cur2 - rst2 * THRESHOLD
    spk2 = (m2 > THRESHOLD).astype(jnp.float32)
    return spk2 + x, m1, m2


if __name__ == "__main__":
    B, F = 256, 128  # small (batch, features), MNIST-hidden-layer sized
    key = jax.random.PRNGKey(0)
    kx, k1w, k1b, k2w, k2b = jax.random.split(key, 5)

    # Deterministic init mimicking nn.Linear default (uniform in +-1/sqrt(in)).
    bound = 1.0 / jnp.sqrt(jnp.float32(F))
    x = jax.random.normal(kx, (B, F), dtype=jnp.float32)
    w1 = jax.random.uniform(k1w, (F, F), jnp.float32, -bound, bound)
    b1 = jax.random.uniform(k1b, (F,), jnp.float32, -bound, bound)
    w2 = jax.random.uniform(k2w, (F, F), jnp.float32, -bound, bound)
    b2 = jax.random.uniform(k2b, (F,), jnp.float32, -bound, bound)

    # reset_state(): membranes start at zero (init_leaky broadcasts to input shape).
    mem1 = jnp.zeros((B, F), jnp.float32)
    mem2 = jnp.zeros((B, F), jnp.float32)

    # f32 path (exact): multi-step batch grid (256 / 64 = 4 pipelined blocks).
    out, m1n, m2n = spiking_residual_block(x, w1, b1, w2, b2, mem1, mem2,
                                           block_b=64)
    jax.block_until_ready((out, m1n, m2n))

    ref_out, ref_m1, ref_m2 = _reference(x, w1, b1, w2, b2, mem1, mem2)
    assert jnp.allclose(out, ref_out, atol=1e-5), "output mismatch"
    assert jnp.allclose(m1n, ref_m1, atol=1e-5), "mem1 mismatch"
    assert jnp.allclose(m2n, ref_m2, atol=1e-5), "mem2 mismatch"

    # bf16 MXU path (v6e/v7x-oriented). Layer-1 membranes stay close to f32;
    # layer-2 spikes near threshold may legitimately flip at reduced precision,
    # so only sanity-check those.
    out_bf, m1_bf, m2_bf = spiking_residual_block(
        x, w1, b1, w2, b2, mem1, mem2, block_b=64, compute_dtype=jnp.bfloat16)
    jax.block_until_ready((out_bf, m1_bf, m2_bf))
    assert jnp.allclose(m1_bf, ref_m1, atol=5e-2), "bf16 mem1 drifted too far"
    assert bool(jnp.all(jnp.isfinite(out_bf))) and bool(jnp.all(jnp.isfinite(m2_bf)))

    print("KERNEL_OK")
</pallas_src>

<mosaic_0001>
module attributes {stable_mosaic.version = 11 : i64} {
  func.func @_spiking_residual_kernel(%arg0: i32, %arg1: memref<64x128xf32, #tpu.memory_space<vmem>>, %arg2: memref<128x128xf32, #tpu.memory_space<vmem>>, %arg3: memref<1x128xf32, #tpu.memory_space<vmem>>, %arg4: memref<128x128xf32, #tpu.memory_space<vmem>>, %arg5: memref<1x128xf32, #tpu.memory_space<vmem>>, %arg6: memref<64x128xf32, #tpu.memory_space<vmem>>, %arg7: memref<64x128xf32, #tpu.memory_space<vmem>>, %arg8: memref<64x128xf32, #tpu.memory_space<vmem>>, %arg9: memref<64x128xf32, #tpu.memory_space<vmem>>, %arg10: memref<64x128xf32, #tpu.memory_space<vmem>>) attributes {dimension_semantics = [#tpu.dimension_semantics<parallel>], iteration_bounds = array<i64: 4>, scalar_prefetch = 0 : i64, scratch_operands = 0 : i64, tpu.core_type = #tpu.core_type<tc>, window_params = [{transform_indices = @transform_0, window_bounds = array<i64: 64, 128>}, {pipeline_mode = #tpu.pipeline_mode<synchronous>, transform_indices = @transform_1, window_bounds = array<i64: 128, 128>}, {pipeline_mode = #tpu.pipeline_mode<synchronous>, transform_indices = @transform_2, window_bounds = array<i64: 1, 128>}, {pipeline_mode = #tpu.pipeline_mode<synchronous>, transform_indices = @transform_3, window_bounds = array<i64: 128, 128>}, {pipeline_mode = #tpu.pipeline_mode<synchronous>, transform_indices = @transform_4, window_bounds = array<i64: 1, 128>}, {transform_indices = @transform_5, window_bounds = array<i64: 64, 128>}, {transform_indices = @transform_6, window_bounds = array<i64: 64, 128>}, {transform_indices = @transform_7, window_bounds = array<i64: 64, 128>}, {transform_indices = @transform_8, window_bounds = array<i64: 64, 128>}, {transform_indices = @transform_9, window_bounds = array<i64: 64, 128>}]} {
    %c0 = arith.constant 0 : index
    %c0_0 = arith.constant 0 : index
    %0 = vector.load %arg1[%c0, %c0_0] : memref<64x128xf32, #tpu.memory_space<vmem>>, vector<64x128xf32>
    %c0_1 = arith.constant 0 : index
    %c0_2 = arith.constant 0 : index
    %1 = vector.load %arg2[%c0_1, %c0_2] : memref<128x128xf32, #tpu.memory_space<vmem>>, vector<128x128xf32>
    %cst = arith.constant dense<0.000000e+00> : vector<64x128xf32>
    %2 = tpu.matmul %0, %1, %cst {dimension_numbers = #tpu.dot_dimension_numbers<[1], [1], [0], [0], [0, 0, 1, 0], [], []>} : vector<64x128xf32>, vector<128x128xf32>, vector<64x128xf32> -> vector<64x128xf32>
    %c0_3 = arith.constant 0 : index
    %c0_4 = arith.constant 0 : index
    %3 = vector.load %arg3[%c0_3, %c0_4] : memref<1x128xf32, #tpu.memory_space<vmem>>, vector<1x128xf32>
    %4 = vector.broadcast %3 : vector<1x128xf32> to vector<64x128xf32>
    %5 = arith.addf %2, %4 : vector<64x128xf32>
    %c0_5 = arith.constant 0 : index
    %c0_6 = arith.constant 0 : index
    %6 = vector.load %arg6[%c0_5, %c0_6] : memref<64x128xf32, #tpu.memory_space<vmem>>, vector<64x128xf32>
    %cst_7 = arith.constant 0.949999988 : f32
    %7 = vector.broadcast %cst_7 : f32 to vector<64x128xf32>
    %8 = arith.mulf %7, %6 : vector<64x128xf32>
    %9 = arith.addf %8, %5 : vector<64x128xf32>
    %cst_8 = arith.constant 1.000000e+00 : f32
    %10 = vector.broadcast %cst_8 : f32 to vector<64x128xf32>
    %11 = arith.cmpf ogt, %6, %10 : vector<64x128xf32>
    %cst_9 = arith.constant 1.000000e+00 : f32
    %cst_10 = arith.constant 0.000000e+00 : f32
    %12 = vector.broadcast %cst_9 : f32 to vector<64x128xf32>
    %13 = vector.broadcast %cst_10 : f32 to vector<64x128xf32>
    %14 = arith.select %11, %12, %13 : vector<64x128xi1>, vector<64x128xf32>
    %15 = arith.subf %9, %14 : vector<64x128xf32>
    %cst_11 = arith.constant 1.000000e+00 : f32
    %16 = vector.broadcast %cst_11 : f32 to vector<64x128xf32>
    %17 = arith.cmpf ogt, %15, %16 : vector<64x128xf32>
    %cst_12 = arith.constant 1.000000e+00 : f32
    %cst_13 = arith.constant 0.000000e+00 : f32
    %18 = vector.broadcast %cst_12 : f32 to vector<64x128xf32>
    %19 = vector.broadcast %cst_13 : f32 to vector<64x128xf32>
    %20 = arith.select %17, %18, %19 : vector<64x128xi1>, vector<64x128xf32>
    %c0_14 = arith.constant 0 : index
    %c0_15 = arith.constant 0 : index
    %21 = vector.load %arg4[%c0_14, %c0_15] : memref<128x128xf32, #tpu.memory_space<vmem>>, vector<128x128xf32>
    %cst_16 = arith.constant dense<0.000000e+00> : vector<64x128xf32>
    %22 = tpu.matmul %20, %21, %cst_16 {dimension_numbers = #tpu.dot_dimension_numbers<[1], [1], [0], [0], [0, 0, 1, 0], [], []>} : vector<64x128xf32>, vector<128x128xf32>, vector<64x128xf32> -> vector<64x128xf32>
    %c0_17 = arith.constant 0 : index
    %c0_18 = arith.constant 0 : index
    %23 = vector.load %arg5[%c0_17, %c0_18] : memref<1x128xf32, #tpu.memory_space<vmem>>, vector<1x128xf32>
    %24 = vector.broadcast %23 : vector<1x128xf32> to vector<64x128xf32>
    %25 = arith.addf %22, %24 : vector<64x128xf32>
    %c0_19 = arith.constant 0 : index
    %c0_20 = arith.constant 0 : index
    %26 = vector.load %arg7[%c0_19, %c0_20] : memref<64x128xf32, #tpu.memory_space<vmem>>, vector<64x128xf32>
    %cst_21 = arith.constant 0.949999988 : f32
    %27 = vector.broadcast %cst_21 : f32 to vector<64x128xf32>
    %28 = arith.mulf %27, %26 : vector<64x128xf32>
    %29 = arith.addf %28, %25 : vector<64x128xf32>
    %cst_22 = arith.constant 1.000000e+00 : f32
    %30 = vector.broadcast %cst_22 : f32 to vector<64x128xf32>
    %31 = arith.cmpf ogt, %26, %30 : vector<64x128xf32>
    %cst_23 = arith.constant 1.000000e+00 : f32
    %cst_24 = arith.constant 0.000000e+00 : f32
    %32 = vector.broadcast %cst_23 : f32 to vector<64x128xf32>
    %33 = vector.broadcast %cst_24 : f32 to vector<64x128xf32>
    %34 = arith.select %31, %32, %33 : vector<64x128xi1>, vector<64x128xf32>
    %35 = arith.subf %29, %34 : vector<64x128xf32>
    %cst_25 = arith.constant 1.000000e+00 : f32
    %36 = vector.broadcast %cst_25 : f32 to vector<64x128xf32>
    %37 = arith.cmpf ogt, %35, %36 : vector<64x128xf32>
    %cst_26 = arith.constant 1.000000e+00 : f32
    %cst_27 = arith.constant 0.000000e+00 : f32
    %38 = vector.broadcast %cst_26 : f32 to vector<64x128xf32>
    %39 = vector.broadcast %cst_27 : f32 to vector<64x128xf32>
    %40 = arith.select %37, %38, %39 : vector<64x128xi1>, vector<64x128xf32>
    %41 = arith.addf %40, %0 : vector<64x128xf32>
    %c0_28 = arith.constant 0 : index
    %c0_29 = arith.constant 0 : index
    %42 = vector.load %arg8[%c0_28, %c0_29] : memref<64x128xf32, #tpu.memory_space<vmem>>, vector<64x128xf32>
    tpu.vector_store %arg8[%c0_28, %c0_29], %41 {strides = array<i32>} : memref<64x128xf32, #tpu.memory_space<vmem>>, vector<64x128xf32>,
    %c0_30 = arith.constant 0 : index
    %c0_31 = arith.constant 0 : index
    %43 = vector.load %arg9[%c0_30, %c0_31] : memref<64x128xf32, #tpu.memory_space<vmem>>, vector<64x128xf32>
    tpu.vector_store %arg9[%c0_30, %c0_31], %15 {strides = array<i32>} : memref<64x128xf32, #tpu.memory_space<vmem>>, vector<64x128xf32>,
    %c0_32 = arith.constant 0 : index
    %c0_33 = arith.constant 0 : index
    %44 = vector.load %arg10[%c0_32, %c0_33] : memref<64x128xf32, #tpu.memory_space<vmem>>, vector<64x128xf32>
    tpu.vector_store %arg10[%c0_32, %c0_33], %35 {strides = array<i32>} : memref<64x128xf32, #tpu.memory_space<vmem>>, vector<64x128xf32>,
    return
  }
  func.func @transform_0(%arg0: i32) -> (i32, i32) {
    %c0_i32 = arith.constant 0 : i32
    %c0_i32_0 = arith.constant 0 : i32
    return %arg0, %c0_i32 : i32, i32
  }
  func.func @transform_1(%arg0: i32) -> (i32, i32) {
    %c0_i32 = arith.constant 0 : i32
    %c0_i32_0 = arith.constant 0 : i32
    %c0_i32_1 = arith.constant 0 : i32
    return %c0_i32, %c0_i32_0 : i32, i32
  }
  func.func @transform_2(%arg0: i32) -> (i32, i32) {
    %c0_i32 = arith.constant 0 : i32
    %c0_i32_0 = arith.constant 0 : i32
    %c0_i32_1 = arith.constant 0 : i32
    return %c0_i32, %c0_i32_0 : i32, i32
  }
  func.func @transform_3(%arg0: i32) -> (i32, i32) {
    %c0_i32 = arith.constant 0 : i32
    %c0_i32_0 = arith.constant 0 : i32
    %c0_i32_1 = arith.constant 0 : i32
    return %c0_i32, %c0_i32_0 : i32, i32
  }
  func.func @transform_4(%arg0: i32) -> (i32, i32) {
    %c0_i32 = arith.constant 0 : i32
    %c0_i32_0 = arith.constant 0 : i32
    %c0_i32_1 = arith.constant 0 : i32
    return %c0_i32, %c0_i32_0 : i32, i32
  }
  func.func @transform_5(%arg0: i32) -> (i32, i32) {
    %c0_i32 = arith.constant 0 : i32
    %c0_i32_0 = arith.constant 0 : i32
    return %arg0, %c0_i32 : i32, i32
  }
  func.func @transform_6(%arg0: i32) -> (i32, i32) {
    %c0_i32 = arith.constant 0 : i32
    %c0_i32_0 = arith.constant 0 : i32
    return %arg0, %c0_i32 : i32, i32
  }
  func.func @transform_7(%arg0: i32) -> (i32, i32) {
    %c0_i32 = arith.constant 0 : i32
    %c0_i32_0 = arith.constant 0 : i32
    return %arg0, %c0_i32 : i32, i32
  }
  func.func @transform_8(%arg0: i32) -> (i32, i32) {
    %c0_i32 = arith.constant 0 : i32
    %c0_i32_0 = arith.constant 0 : i32
    return %arg0, %c0_i32 : i32, i32
  }
  func.func @transform_9(%arg0: i32) -> (i32, i32) {
    %c0_i32 = arith.constant 0 : i32
    %c0_i32_0 = arith.constant 0 : i32
    return %arg0, %c0_i32 : i32, i32
  }
}

</mosaic_0001>

<llo_original>
// kernel: spiking_residual_block.1
$region0: #{spiking_residual_block.1}
  #allocation0 [shape = 'u32[]', space=smem, size = 0x4, offset = 0x4, fixed_abs, tag = 'smem constant byte address 0x4 - core index']
  #allocation1 [shape = 'u32[144,128]{1,0:T(1,128)}', space=vmem, size = 0x12000, scoped, tag = 'internal scratch']
  %s0 = inlined_call_operand.vmem [shape: f32[256,128], index: 0, kind: input, shape index: {}]
  %s1 = inlined_call_operand.vmem [shape: f32[128,128], index: 1, kind: input, shape index: {}]
  %s2 = inlined_call_operand.vmem [shape: f32[1,128], index: 2, kind: input, shape index: {}]
  %s3 = inlined_call_operand.vmem [shape: f32[128,128], index: 3, kind: input, shape index: {}]
  %s4 = inlined_call_operand.vmem [shape: f32[1,128], index: 4, kind: input, shape index: {}]
  %s5 = inlined_call_operand.hbm [shape: f32[256,128], index: 5, kind: input, shape index: {}, may-alias: {5,8}]
  %s6 = inlined_call_operand.hbm [shape: f32[256,128], index: 6, kind: input, shape index: {}, may-alias: {6,9}]
  %s7 = inlined_call_operand.hbm [shape: f32[256,128], index: 7, kind: output, shape index: {0}]
  %s8 = inlined_call_operand.hbm [shape: f32[256,128], index: 8, kind: output, shape index: {1}, may-alias: {5,8}]
  %s9 = inlined_call_operand.hbm [shape: f32[256,128], index: 9, kind: output, shape index: {2}, may-alias: {6,9}]
  %10 = xla_tuple %s7, %s8, %s9
  %s11 = sld [smem:[#allocation0]]
  $region85: #{spiking_residual_block.1} parent=0
    _
  %s13 = ssub.s32 1, %s11
  %s14 = scalar_select 0, %s13, %s11
  $region1: #{spiking_residual_block.1} parent=0
    #allocation2 [shape = 'u8[65536]{0}', space=vmem, size = 0x10000, scoped, tag = 'input window, operand 5']
    #allocation3 [shape = 's32[2]{0}', space=sflag, size = 0x8, scoped, tag = 'scoped memory for spiking_residual_block.1']
    #allocation4 [shape = 's32[2]{0}', space=sflag, size = 0x8, scoped, tag = 'scoped memory for spiking_residual_block.1']
    #allocation5 [shape = 'u8[65536]{0}', space=vmem, size = 0x10000, scoped, tag = 'input window, operand 6']
    #allocation6 [shape = 's32[2]{0}', space=sflag, size = 0x8, scoped, tag = 'scoped memory for spiking_residual_block.1']
    #allocation7 [shape = 'u8[65536]{0}', space=vmem, size = 0x10000, scoped, tag = 'output window, operand 0']
    #allocation8 [shape = 'u8[65536]{0}', space=vmem, size = 0x10000, scoped, tag = 'output window, operand 1']
    #allocation9 [shape = 's32[2]{0}', space=sflag, size = 0x8, scoped, tag = 'scoped memory for spiking_residual_block.1']
    #allocation10 [shape = 'u8[65536]{0}', space=vmem, size = 0x10000, scoped, tag = 'output window, operand 2']
    %15 = vsyncpa [#allocation3], 0
    %s16 = scalar_lea.sflag [#allocation3], 1
    %17 = vsyncpa %s16, 0
    %18 = vsyncpa [#allocation6], 0
    %s19 = scalar_lea.sflag [#allocation6], 1
    %20 = vsyncpa %s19, 0
    %21 = vsyncpa [#allocation4], 0
    %s22 = scalar_lea.sflag [#allocation4], 1
    %23 = vsyncpa %s22, 0
    %24 = vsyncpa [#allocation9], 0
    %s25 = scalar_lea.sflag [#allocation9], 1
    %26 = vsyncpa %s25, 0
    loop: start=0, step=1, limit=6
    $region2: #{spiking_residual_block.1} parent=1 // loop_pre_header
      _
    $region3: #{spiking_residual_block.1} parent=1 // loop_header
      %s28 = sphi 0, %s32
      %p29 = scmp.ge.s32.totalorder %s28, 6
      %s38 = sphi 0, %s40
      %s41 = sphi 0, %s38
      %s42 = sphi 0, %s41
      %s58 = sphi 0, %s42
      %s62 = sphi 0, %s62
      %s64 = sphi 0, %s62
      %s65 = sphi 0, %s64
      %s79 = sphi 0, %s65
      %s83 = sphi 0, %s83
      %s85 = sphi 0, %s83
      %s86 = sphi 0, %s85
      %s100 = sphi 0, %s86
      %s104 = sphi 0, %s104
      %s106 = sphi 0, %s104
      %s107 = sphi 0, %s106
      %s121 = sphi 0, %s107
      %s125 = sphi 0, %s125
      %s127 = sphi 0, %s125
      %s128 = sphi 0, %s127
      %s142 = sphi 0, %s128
      %s148 = sphi 0, %s150
      %s151 = sphi 0, %s148
      %s152 = sphi 0, %s151
      %s168 = sphi 0, %s152
      %s174 = sphi 0, %s176
      %s177 = sphi 0, %s174
      %s178 = sphi 0, %s177
      %s194 = sphi 0, %s178
      %s200 = sphi 0, %s202
      %s203 = sphi 0, %s200
      %s204 = sphi 0, %s203
      %s220 = sphi 0, %s204
      %s226 = sphi 0, %s228
      %s229 = sphi 0, %s226
      %s230 = sphi 0, %s229
      %s246 = sphi 0, %s230
      %s252 = sphi 0, %s254
      %s255 = sphi 0, %s252
      %s256 = sphi 0, %s255
      %s272 = sphi 0, %s256
    $region4: #{spiking_residual_block.1} parent=1 // loop_header_branch
      %31 = sbr.rel (%p29) target = $region8
    $region5: #{spiking_residual_block.1} parent=1 // loop_body
      %s33 = ssub.s32 %s28, 1
      %s34 = ssub.s32 %s28, 2
      %s35 = sadd.s32 %s28, 1
      %s36 = ssub.s32 %s28, %s35
      %p37 = scmp.eq.s32.totalorder %s36, 0
      %s39 = sadd.s32 %s38, 1
      %s40 = scalar_select %p37, %s38, %s39
      %p43 = pneg %p37
      %p44 = scmp.eq.s32.totalorder %s28, 3
      %p45 = por %p43, %p44
      %p46 = scmp.ne.s32.totalorder %s38, %s41
      %p47 = scmp.eq.s32.totalorder %s28, 0
      %p48 = por %p46, %p47
      %p49 = scmp.ne.s32.totalorder %s38, %s41
      %p50 = scmp.eq.s32.totalorder %s33, 3
      %p51 = por %p49, %p50
      %p52 = scmp.ne.s32.totalorder %s41, %s42
      %p53 = scmp.eq.s32.totalorder %s33, 0
      %p54 = por %p52, %p53
      %p55 = scmp.ne.s32.totalorder %s41, %s42
      %p56 = scmp.eq.s32.totalorder %s34, 3
      %p57 = por %p55, %p56
      %p59 = scmp.ne.s32.totalorder %s42, %s58
      %p60 = scmp.eq.s32.totalorder %s34, 0
      %p61 = por %p59, %p60
      %s63 = sadd.s32 %s62, 1
      %p66 = scmp.eq.s32.totalorder %s28, 3
      %p67 = scmp.ne.s32.totalorder %s62, %s64
      %p68 = scmp.eq.s32.totalorder %s28, 0
      %p69 = por %p67, %p68
      %p70 = scmp.ne.s32.totalorder %s62, %s64
      %p71 = scmp.eq.s32.totalorder %s33, 3
      %p72 = por %p70, %p71
      %p73 = scmp.ne.s32.totalorder %s64, %s65
      %p74 = scmp.eq.s32.totalorder %s33, 0
      %p75 = por %p73, %p74
      %p76 = scmp.ne.s32.totalorder %s64, %s65
      %p77 = scmp.eq.s32.totalorder %s34, 3
      %p78 = por %p76, %p77
      %p80 = scmp.ne.s32.totalorder %s65, %s79
      %p81 = scmp.eq.s32.totalorder %s34, 0
      %p82 = por %p80, %p81
      %s84 = sadd.s32 %s83, 1
      %p87 = scmp.eq.s32.totalorder %s28, 3
      %p88 = scmp.ne.s32.totalorder %s83, %s85
      %p89 = scmp.eq.s32.totalorder %s28, 0
      %p90 = por %p88, %p89
      %p91 = scmp.ne.s32.totalorder %s83, %s85
      %p92 = scmp.eq.s32.totalorder %s33, 3
      %p93 = por %p91, %p92
      %p94 = scmp.ne.s32.totalorder %s85, %s86
      %p95 = scmp.eq.s32.totalorder %s33, 0
      %p96 = por %p94, %p95
      %p97 = scmp.ne.s32.totalorder %s85, %s86
      %p98 = scmp.eq.s32.totalorder %s34, 3
      %p99 = por %p97, %p98
      %p101 = scmp.ne.s32.totalorder %s86, %s100
      %p102 = scmp.eq.s32.totalorder %s34, 0
      %p103 = por %p101, %p102
      %s105 = sadd.s32 %s104, 1
      %p108 = scmp.eq.s32.totalorder %s28, 3
      %p109 = scmp.ne.s32.totalorder %s104, %s106
      %p110 = scmp.eq.s32.totalorder %s28, 0
      %p111 = por %p109, %p110
      %p112 = scmp.ne.s32.totalorder %s104, %s106
      %p113 = scmp.eq.s32.totalorder %s33, 3
      %p114 = por %p112, %p113
      %p115 = scmp.ne.s32.totalorder %s106, %s107
      %p116 = scmp.eq.s32.totalorder %s33, 0
      %p117 = por %p115, %p116
      %p118 = scmp.ne.s32.totalorder %s106, %s107
      %p119 = scmp.eq.s32.totalorder %s34, 3
      %p120 = por %p118, %p119
      %p122 = scmp.ne.s32.totalorder %s107, %s121
      %p123 = scmp.eq.s32.totalorder %s34, 0
      %p124 = por %p122, %p123
      %s126 = sadd.s32 %s125, 1
      %p129 = scmp.eq.s32.totalorder %s28, 3
      %p130 = scmp.ne.s32.totalorder %s125, %s127
      %p131 = scmp.eq.s32.totalorder %s28, 0
      %p132 = por %p130, %p131
      %p133 = scmp.ne.s32.totalorder %s125, %s127
      %p134 = scmp.eq.s32.totalorder %s33, 3
      %p135 = por %p133, %p134
      %p136 = scmp.ne.s32.totalorder %s127, %s128
      %p137 = scmp.eq.s32.totalorder %s33, 0
      %p138 = por %p136, %p137
      %p139 = scmp.ne.s32.totalorder %s127, %s128
      %p140 = scmp.eq.s32.totalorder %s34, 3
      %p141 = por %p139, %p140
      %p143 = scmp.ne.s32.totalorder %s128, %s142
      %p144 = scmp.eq.s32.totalorder %s34, 0
      %p145 = por %p143, %p144
      %s146 = ssub.s32 %s28, %s35
      %p147 = scmp.eq.s32.totalorder %s146, 0
      %s149 = sadd.s32 %s148, 1
      %s150 = scalar_select %p147, %s148, %s149
      %p153 = pneg %p147
      %p154 = scmp.eq.s32.totalorder %s28, 3
      %p155 = por %p153, %p154
      %p156 = scmp.ne.s32.totalorder %s148, %s151
      %p157 = scmp.eq.s32.totalorder %s28, 0
      %p158 = por %p156, %p157
      %p159 = scmp.ne.s32.totalorder %s148, %s151
      %p160 = scmp.eq.s32.totalorder %s33, 3
      %p161 = por %p159, %p160
      %p162 = scmp.ne.s32.totalorder %s151, %s152
      %p163 = scmp.eq.s32.totalorder %s33, 0
      %p164 = por %p162, %p163
      %p165 = scmp.ne.s32.totalorder %s151, %s152
      %p166 = scmp.eq.s32.totalorder %s34, 3
      %p167 = por %p165, %p166
      %p169 = scmp.ne.s32.totalorder %s152, %s168
      %p170 = scmp.eq.s32.totalorder %s34, 0
      %p171 = por %p169, %p170
      %s172 = ssub.s32 %s28, %s35
      %p173 = scmp.eq.s32.totalorder %s172, 0
      %s175 = sadd.s32 %s174, 1
      %s176 = scalar_select %p173, %s174, %s175
      %p179 = pneg %p173
      %p180 = scmp.eq.s32.totalorder %s28, 3
      %p181 = por %p179, %p180
      %p182 = scmp.ne.s32.totalorder %s174, %s177
      %p183 = scmp.eq.s32.totalorder %s28, 0
      %p184 = por %p182, %p183
      %p185 = scmp.ne.s32.totalorder %s174, %s177
      %p186 = scmp.eq.s32.totalorder %s33, 3
      %p187 = por %p185, %p186
      %p188 = scmp.ne.s32.totalorder %s177, %s178
      %p189 = scmp.eq.s32.totalorder %s33, 0
      %p190 = por %p188, %p189
      %p191 = scmp.ne.s32.totalorder %s177, %s178
      %p192 = scmp.eq.s32.totalorder %s34, 3
      %p193 = por %p191, %p192
      %p195 = scmp.ne.s32.totalorder %s178, %s194
      %p196 = scmp.eq.s32.totalorder %s34, 0
      %p197 = por %p195, %p196
      %s198 = ssub.s32 %s28, %s35
      %p199 = scmp.eq.s32.totalorder %s198, 0
      %s201 = sadd.s32 %s200, 1
      %s202 = scalar_select %p199, %s200, %s201
      %p205 = pneg %p199
      %p206 = scmp.eq.s32.totalorder %s28, 3
      %p207 = por %p205, %p206
      %p208 = scmp.ne.s32.totalorder %s200, %s203
      %p209 = scmp.eq.s32.totalorder %s28, 0
      %p210 = por %p208, %p209
      %p211 = scmp.ne.s32.totalorder %s200, %s203
      %p212 = scmp.eq.s32.totalorder %s33, 3
      %p213 = por %p211, %p212
      %p214 = scmp.ne.s32.totalorder %s203, %s204
      %p215 = scmp.eq.s32.totalorder %s33, 0
      %p216 = por %p214, %p215
      %p217 = scmp.ne.s32.totalorder %s203, %s204
      %p218 = scmp.eq.s32.totalorder %s34, 3
      %p219 = por %p217, %p218
      %p221 = scmp.ne.s32.totalorder %s204, %s220
      %p222 = scmp.eq.s32.totalorder %s34, 0
      %p223 = por %p221, %p222
      %s224 = ssub.s32 %s28, %s35
      %p225 = scmp.eq.s32.totalorder %s224, 0
      %s227 = sadd.s32 %s226, 1
      %s228 = scalar_select %p225, %s226, %s227
      %p231 = pneg %p225
      %p232 = scmp.eq.s32.totalorder %s28, 3
      %p233 = por %p231, %p232
      %p234 = scmp.ne.s32.totalorder %s226, %s229
      %p235 = scmp.eq.s32.totalorder %s28, 0
      %p236 = por %p234, %p235
      %p237 = scmp.ne.s32.totalorder %s226, %s229
      %p238 = scmp.eq.s32.totalorder %s33, 3
      %p239 = por %p237, %p238
      %p240 = scmp.ne.s32.totalorder %s229, %s230
      %p241 = scmp.eq.s32.totalorder %s33, 0
      %p242 = por %p240, %p241
      %p243 = scmp.ne.s32.totalorder %s229, %s230
      %p244 = scmp.eq.s32.totalorder %s34, 3
      %p245 = por %p243, %p244
      %p247 = scmp.ne.s32.totalorder %s230, %s246
      %p248 = scmp.eq.s32.totalorder %s34, 0
      %p249 = por %p247, %p248
      %s250 = ssub.s32 %s28, %s35
      %p251 = scmp.eq.s32.totalorder %s250, 0
      %s253 = sadd.s32 %s252, 1
      %s254 = scalar_select %p251, %s252, %s253
      %p257 = pneg %p251
      %p258 = scmp.eq.s32.totalorder %s28, 3
      %p259 = por %p257, %p258
      %p260 = scmp.ne.s32.totalorder %s252, %s255
      %p261 = scmp.eq.s32.totalorder %s28, 0
      %p262 = por %p260, %p261
      %p263 = scmp.ne.s32.totalorder %s252, %s255
      %p264 = scmp.eq.s32.totalorder %s33, 3
      %p265 = por %p263, %p264
      %p266 = scmp.ne.s32.totalorder %s255, %s256
      %p267 = scmp.eq.s32.totalorder %s33, 0
      %p268 = por %p266, %p267
      %p269 = scmp.ne.s32.totalorder %s255, %s256
      %p270 = scmp.eq.s32.totalorder %s34, 3
      %p271 = por %p269, %p270
      %p273 = scmp.ne.s32.totalorder %s256, %s272
      %p274 = scmp.eq.s32.totalorder %s34, 0
      %p275 = por %p273, %p274
      %p276 = scmp.le.s32.totalorder 1, %s28
      %p277 = scmp.lt.s32.totalorder %s28, 5
      %p278 = pnand %p276, %p277
      %p279 = pneg %p278
      // Predicated region
      $region9: #{spiking_residual_block.1} parent=5 // pred_check
        _
      $region10: #{spiking_residual_block.1} parent=5 // pred_check_branch
        %281 = sbr.rel (%p278) target = $region12
      $region11: #{spiking_residual_block.1} parent=5 // pred_region
        %s282 = ssub.s32 %s28, 1
        // Predicated region
        $region13: #{spiking_residual_block.1} parent=11 // pred_check
          %p283 = pneg %p75
        $region14: #{spiking_residual_block.1} parent=11 // pred_check_branch
          %285 = sbr.rel (%p283) target = $region16
        $region15: #{spiking_residual_block.1} parent=11 // pred_region
          _
        $region16: #{spiking_residual_block.1} parent=11 // pred_fallthru
          _
        // Predicated region
        $region17: #{spiking_residual_block.1} parent=11 // pred_check
          %p286 = pneg %p96
        $region18: #{spiking_residual_block.1} parent=11 // pred_check_branch
          %288 = sbr.rel (%p286) target = $region20
        $region19: #{spiking_residual_block.1} parent=11 // pred_region
          _
        $region20: #{spiking_residual_block.1} parent=11 // pred_fallthru
          _
        // Predicated region
        $region21: #{spiking_residual_block.1} parent=11 // pred_check
          %p289 = pneg %p117
        $region22: #{spiking_residual_block.1} parent=11 // pred_check_branch
          %291 = sbr.rel (%p289) target = $region24
        $region23: #{spiking_residual_block.1} parent=11 // pred_region
          _
        $region24: #{spiking_residual_block.1} parent=11 // pred_fallthru
          _
        // Predicated region
        $region25: #{spiking_residual_block.1} parent=11 // pred_check
          %p292 = pneg %p138
        $region26: #{spiking_residual_block.1} parent=11 // pred_check_branch
          %294 = sbr.rel (%p292) target = $region28
        $region27: #{spiking_residual_block.1} parent=11 // pred_region
          _
        $region28: #{spiking_residual_block.1} parent=11 // pred_fallthru
          _
      $region12: #{spiking_residual_block.1} parent=5 // pred_fallthru
        _
      %p295 = scmp.lt.s32.totalorder %s28, 4
      // Predicated region
      $region29: #{spiking_residual_block.1} parent=5 // pred_check
        %p296 = pneg %p295
      $region30: #{spiking_residual_block.1} parent=5 // pred_check_branch
        %298 = sbr.rel (%p296) target = $region32
      $region31: #{spiking_residual_block.1} parent=5 // pred_region
        // Predicated region
        $region33: #{spiking_residual_block.1} parent=31 // pred_check
          %p299 = pneg %p48
        $region34: #{spiking_residual_block.1} parent=31 // pred_check_branch
          %301 = sbr.rel (%p299) target = $region36
        $region35: #{spiking_residual_block.1} parent=31 // pred_region
          %s302 = smul.u32 8, %s28
          %p303 = scmp.lt.s32.totalorder %s302, 31
          %s304 = scalar_select %p303, %s302, 31
          %s305 = smul.addr %s304, 8
          %s306 = scalar_lea.vmem %s0, %s305
          %s307 = smul.u32 8, %s28
        $region36: #{spiking_residual_block.1} parent=31 // pred_fallthru
          _
        // Predicated region
        $region37: #{spiking_residual_block.1} parent=31 // pred_check
          %p308 = pneg %p158
        $region38: #{spiking_residual_block.1} parent=31 // pred_check_branch
          %310 = sbr.rel (%p308) target = $region40
        $region39: #{spiking_residual_block.1} parent=31 // pred_region
          %s311 = sand.u32 %s148, 1
          %s312 = scalar_lea.sflag [#allocation3], %s311
          %s313 = sand.u32 %s148, 1
          %s314 = smul.addr %s313, 64
          %s315 = scalar_lea.vmem [#allocation2], %s314
          %s316 = smul.u32 8, %s28
          %s318 = ssub.s32 1024, 1024
          %319 = vsyncadd %s312, %s318
          %s320 = smul.addr %s316, 128
          %s321 = scalar_lea.hbm %s5, %s320
          %s322 = sshll.u32 %s315, 4
          %s323 = int_to_ptr.vmem [resolvable:$true] %s322
          %328 = dma.hbm_to_vmem [thread:$0]  %s321, 1024, %s323, %s312, 128, 128, 8
        $region40: #{spiking_residual_block.1} parent=31 // pred_fallthru
          _
        // Predicated region
        $region41: #{spiking_residual_block.1} parent=31 // pred_check
          %p329 = pneg %p184
        $region42: #{spiking_residual_block.1} parent=31 // pred_check_branch
          %331 = sbr.rel (%p329) target = $region44
        $region43: #{spiking_residual_block.1} parent=31 // pred_region
          %s332 = sand.u32 %s174, 1
          %s333 = scalar_lea.sflag [#allocation6], %s332
          %s334 = sand.u32 %s174, 1
          %s335 = smul.addr %s334, 64
          %s336 = scalar_lea.vmem [#allocation5], %s335
          %s337 = smul.u32 8, %s28
          %s339 = ssub.s32 1024, 1024
          %340 = vsyncadd %s333, %s339
          %s341 = smul.addr %s337, 128
          %s342 = scalar_lea.hbm %s6, %s341
          %s343 = sshll.u32 %s336, 4
          %s344 = int_to_ptr.vmem [resolvable:$true] %s343
          %349 = dma.hbm_to_vmem [thread:$0]  %s342, 1024, %s344, %s333, 128, 128, 8
        $region44: #{spiking_residual_block.1} parent=31 // pred_fallthru
          _
      $region32: #{spiking_residual_block.1} parent=5 // pred_fallthru
        _
      %p350 = scmp.le.s32.totalorder 1, %s28
      %p351 = scmp.lt.s32.totalorder %s28, 5
      %p352 = pnand %p350, %p351
      %p353 = pneg %p352
      // Predicated region
      $region45: #{spiking_residual_block.1} parent=5 // pred_check
        _
      $region46: #{spiking_residual_block.1} parent=5 // pred_check_branch
        %355 = sbr.rel (%p352) target = $region48
      $region47: #{spiking_residual_block.1} parent=5 // pred_region
        %s356 = ssub.s32 %s28, 1
        %s357 = sand.u32 %s151, 1
        %s358 = scalar_lea.sflag [#allocation3], %s357
        %s359 = sand.u32 %s151, 1
        %s360 = smul.addr %s359, 64
        %s361 = scalar_lea.vmem [#allocation2], %s360
        // Predicated region
        $region49: #{spiking_residual_block.1} parent=47 // pred_check
          %p362 = pneg %p164
        $region50: #{spiking_residual_block.1} parent=47 // pred_check_branch
          %364 = sbr.rel (%p362) target = $region52
        $region51: #{spiking_residual_block.1} parent=47 // pred_region
          %365 = dma.done %s358, 1024
        $region52: #{spiking_residual_block.1} parent=47 // pred_fallthru
          _
        %s366 = sand.u32 %s177, 1
        %s367 = scalar_lea.sflag [#allocation6], %s366
        %s368 = sand.u32 %s177, 1
        %s369 = smul.addr %s368, 64
        %s370 = scalar_lea.vmem [#allocation5], %s369
        // Predicated region
        $region53: #{spiking_residual_block.1} parent=47 // pred_check
          %p371 = pneg %p190
        $region54: #{spiking_residual_block.1} parent=47 // pred_check_branch
          %373 = sbr.rel (%p371) target = $region56
        $region55: #{spiking_residual_block.1} parent=47 // pred_region
          %374 = dma.done %s367, 1024
        $region56: #{spiking_residual_block.1} parent=47 // pred_fallthru
          _
        %s375 = smul.u32 8, %s33
        %p376 = scmp.lt.s32.totalorder %s375, 31
        %s377 = scalar_select %p376, %s375, 31
        %s378 = smul.addr %s377, 8
        %s379 = scalar_lea.vmem %s0, %s378
        %p380 = pneg %p54
        %p381 = pneg %p51
        %p382 = pneg %p75
        %p383 = pneg %p72
        %p384 = pneg %p96
        %p385 = pneg %p93
        %p386 = pneg %p117
        %p387 = pneg %p114
        %p388 = pneg %p138
        %p389 = pneg %p135
        %s390 = sand.u32 %s151, 1
        %s391 = scalar_lea.sflag [#allocation3], %s390
        %s392 = sand.u32 %s151, 1
        %s393 = smul.addr %s392, 64
        %s394 = scalar_lea.vmem [#allocation2], %s393
        %p395 = pneg %p164
        %p396 = pneg %p161
        %s397 = sand.u32 %s177, 1
        %s398 = scalar_lea.sflag [#allocation6], %s397
        %s399 = sand.u32 %s177, 1
        %s400 = smul.addr %s399, 64
        %s401 = scalar_lea.vmem [#allocation5], %s400
        %p402 = pneg %p190
        %p403 = pneg %p187
        %p404 = pneg %p216
        %p405 = pneg %p213
        %s406 = sand.u32 %s203, 1
        %s407 = scalar_lea.sflag [#allocation4], %s406
        %s408 = sand.u32 %s203, 1
        %s409 = smul.addr %s408, 64
        %s410 = scalar_lea.vmem [#allocation7], %s409
        %p411 = pneg %p242
        %p412 = pneg %p239
        %s413 = sand.u32 %s33, 1
        %s414 = scalar_lea.sflag [#allocation9], %s413
        %s415 = sand.u32 %s229, 1
        %s416 = smul.addr %s415, 64
        %s417 = scalar_lea.vmem [#allocation8], %s416
        %p418 = pneg %p268
        %p419 = pneg %p265
        %s420 = sand.u32 %s33, 1
        %s421 = scalar_lea.sflag [#allocation9], %s420
        %s422 = sand.u32 %s255, 1
        %s423 = smul.addr %s422, 64
        %s424 = scalar_lea.vmem [#allocation10], %s423
        %s425 = smul.u32 8, %s33
        %p426 = scmp.lt.s32.totalorder %s425, 31
        %s427 = scalar_select %p426, %s425, 31
        %s428 = smul.addr %s427, 8
        %s429 = scalar_lea.vmem %s0, %s428
        %s430 = smul.u32 8, %s33
        %s431 = smul.u32 8, %s33
        %s432 = smul.u32 8, %s33
        %s433 = smul.u32 8, %s33
        %s434 = smul.u32 8, %s33
        %s435 = smul.u32 8, %s33
        %v436 = vld [vmem:[%s429] sm:$0xff]
        %v437 = vld [vmem:[%s429 + $0x8] sm:$0xff]
        %v438 = vld [vmem:[%s429 + $0x10] sm:$0xff]
        %v439 = vld [vmem:[%s429 + $0x18] sm:$0xff]
        %v440 = vld [vmem:[%s429 + $0x20] sm:$0xff]
        %v441 = vld [vmem:[%s429 + $0x28] sm:$0xff]
        %v442 = vld [vmem:[%s429 + $0x30] sm:$0xff]
        %v443 = vld [vmem:[%s429 + $0x38] sm:$0xff]
        %v444 = vld [vmem:[%s1] sm:$0xff]
        %v445 = vld [vmem:[%s1 + $0x8] sm:$0xff]
        %v446 = vld [vmem:[%s1 + $0x10] sm:$0xff]
        %v447 = vld [vmem:[%s1 + $0x18] sm:$0xff]
        %v448 = vld [vmem:[%s1 + $0x20] sm:$0xff]
        %v449 = vld [vmem:[%s1 + $0x28] sm:$0xff]
        %v450 = vld [vmem:[%s1 + $0x30] sm:$0xff]
        %v451 = vld [vmem:[%s1 + $0x38] sm:$0xff]
        %v452 = vld [vmem:[%s1 + $0x40] sm:$0xff]
        %v453 = vld [vmem:[%s1 + $0x48] sm:$0xff]
        %v454 = vld [vmem:[%s1 + $0x50] sm:$0xff]
        %v455 = vld [vmem:[%s1 + $0x58] sm:$0xff]
        %v456 = vld [vmem:[%s1 + $0x60] sm:$0xff]
        %v457 = vld [vmem:[%s1 + $0x68] sm:$0xff]
        %v458 = vld [vmem:[%s1 + $0x70] sm:$0xff]
        %v459 = vld [vmem:[%s1 + $0x78] sm:$0xff]
        %v460 = vld [vmem:[%s2] sm:$0x1]
        %v462 = vlaneseq
        %v463 = vshrl.u32 %v462, 7
        %v464 = vsub.s32 0, %v463
        %v465 = vrot.slane %v460, %v464
        %467 = vmatprep.subr.mxu0 0.0
        %468 = vmatpush1.xpose.msra.mxu0 %v444
        %469 = vmatprep.subr.mxu0 0.0
        %470 = vmatpush1.xpose.msra.mxu0 %v445
        %471 = vmatprep.subr.mxu0 0.0
        %472 = vmatpush1.xpose.msra.mxu0 %v446
        %473 = vmatprep.subr.mxu0 0.0
        %474 = vmatpush1.xpose.msra.mxu0 %v447
        %475 = vmatprep.subr.mxu0 0.0
        %476 = vmatpush1.xpose.msra.mxu0 %v448
        %477 = vmatprep.subr.mxu0 0.0
        %478 = vmatpush1.xpose.msra.mxu0 %v449
        %479 = vmatprep.subr.mxu0 0.0
        %480 = vmatpush1.xpose.msra.mxu0 %v450
        %481 = vmatprep.subr.mxu0 0.0
        %482 = vmatpush1.xpose.msra.mxu0 %v451
        %483 = vmatprep.subr.mxu0 0.0
        %484 = vmatpush1.xpose.msra.mxu0 %v452
        %485 = vmatprep.subr.mxu0 0.0
        %486 = vmatpush1.xpose.msra.mxu0 %v453
        %487 = vmatprep.subr.mxu0 0.0
        %488 = vmatpush1.xpose.msra.mxu0 %v454
        %489 = vmatprep.subr.mxu0 0.0
        %490 = vmatpush1.xpose.msra.mxu0 %v455
        %491 = vmatprep.subr.mxu0 0.0
        %492 = vmatpush1.xpose.msra.mxu0 %v456
        %493 = vmatprep.subr.mxu0 0.0
        %494 = vmatpush1.xpose.msra.mxu0 %v457
        %495 = vmatprep.subr.mxu0 0.0
        %496 = vmatpush1.xpose.msra.mxu0 %v458
        %497 = vmatprep.subr.mxu0 0.0
        %498 = vmatpush1.xpose.msra.mxu0 %v459
        %499 = vmatprep.subr.mxu0 0.0
        %500 = vmatpush1.xpose.msra.mxu0 0.0
        %501 = vmatprep.subr.mxu0 0.0
        %502 = vmatpush1.xpose.msra.mxu0 0.0
        %503 = vmatprep.subr.mxu0 0.0
        %504 = vmatpush1.xpose.msra.mxu0 0.0
        %505 = vmatprep.subr.mxu0 0.0
        %506 = vmatpush1.xpose.msra.mxu0 0.0
        %507 = vmatprep.subr.mxu0 0.0
        %508 = vmatpush1.xpose.msra.mxu0 0.0
        %509 = vmatprep.subr.mxu0 0.0
        %510 = vmatpush1.xpose.msra.mxu0 0.0
        %511 = vmatprep.subr.mxu0 0.0
        %512 = vmatpush1.xpose.msra.mxu0 0.0
        %513 = vmatprep.subr.mxu0 0.0
        %514 = vmatpush1.xpose.msra.mxu0 0.0
        %515 = vmatprep.subr.mxu0 0.0
        %516 = vmatpush1.xpose.msra.mxu0 0.0
        %517 = vmatprep.subr.mxu0 0.0
        %518 = vmatpush1.xpose.msra.mxu0 0.0
        %519 = vmatprep.subr.mxu0 0.0
        %520 = vmatpush1.xpose.msra.mxu0 0.0
        %521 = vmatprep.subr.mxu0 0.0
        %522 = vmatpush1.xpose.msra.mxu0 0.0
        %523 = vmatprep.subr.mxu0 0.0
        %524 = vmatpush1.xpose.msra.mxu0 0.0
        %525 = vmatprep.subr.mxu0 0.0
        %526 = vmatpush1.xpose.msra.mxu0 0.0
        %527 = vmatprep.subr.mxu0 0.0
        %528 = vmatpush1.xpose.msra.mxu0 0.0
        %529 = vmatprep.subr.mxu0 0.0
        %530 = vmatpush1.xpose.msra.mxu0 0.0
        %531 = vmatprep.mubr.f32.mxu0 0.0
        %532 = vmatmul.mubr.f32.gmra.mrb[0].mxu0 %v436
        %v533 = vpop.f32.mrb[0].mxu0
        %v534 = vadd.f32 %v465, %v533
        %v535 = vpop.f32.mrb[0].mxu0
        %536 = vmatprep.mubr.f32.mxu0 0.0
        %537 = vmatmul.mubr.f32.gmra.mrb[0].mxu0 %v437
        %v538 = vpop.f32.mrb[0].mxu0
        %v539 = vadd.f32 %v465, %v538
        %v540 = vpop.f32.mrb[0].mxu0
        %541 = vmatprep.mubr.f32.mxu0 0.0
        %542 = vmatmul.mubr.f32.gmra.mrb[0].mxu0 %v438
        %v543 = vpop.f32.mrb[0].mxu0
        %v544 = vadd.f32 %v465, %v543
        %v545 = vpop.f32.mrb[0].mxu0
        %546 = vmatprep.mubr.f32.mxu0 0.0
        %547 = vmatmul.mubr.f32.gmra.mrb[0].mxu0 %v439
        %v548 = vpop.f32.mrb[0].mxu0
        %v549 = vadd.f32 %v465, %v548
        %v550 = vpop.f32.mrb[0].mxu0
        %551 = vmatprep.mubr.f32.mxu0 0.0
        %552 = vmatmul.mubr.f32.gmra.mrb[0].mxu0 %v440
        %v553 = vpop.f32.mrb[0].mxu0
        %v554 = vadd.f32 %v465, %v553
        %v555 = vpop.f32.mrb[0].mxu0
        %556 = vmatprep.mubr.f32.mxu0 0.0
        %557 = vmatmul.mubr.f32.gmra.mrb[0].mxu0 %v441
        %v558 = vpop.f32.mrb[0].mxu0
        %v559 = vadd.f32 %v465, %v558
        %v560 = vpop.f32.mrb[0].mxu0
        %561 = vmatprep.mubr.f32.mxu0 0.0
        %562 = vmatmul.mubr.f32.gmra.mrb[0].mxu0 %v442
        %v563 = vpop.f32.mrb[0].mxu0
        %v564 = vadd.f32 %v465, %v563
        %v565 = vpop.f32.mrb[0].mxu0
        %566 = vmatprep.mubr.f32.mxu0 0.0
        %567 = vmatmul.mubr.f32.gmra.mrb[0].mxu0 %v443
        %v568 = vpop.f32.mrb[0].mxu0
        %v569 = vadd.f32 %v465, %v568
        %v570 = vpop.f32.mrb[0].mxu0
        %571 = vdwg.mxu0
        %v572 = vld [vmem:[%s361] sm:$0xff]
        %v573 = vld [vmem:[%s361 + $0x8] sm:$0xff]
        %v574 = vld [vmem:[%s361 + $0x10] sm:$0xff]
        %v575 = vld [vmem:[%s361 + $0x18] sm:$0xff]
        %v576 = vld [vmem:[%s361 + $0x20] sm:$0xff]
        %v577 = vld [vmem:[%s361 + $0x28] sm:$0xff]
        %v578 = vld [vmem:[%s361 + $0x30] sm:$0xff]
        %v579 = vld [vmem:[%s361 + $0x38] sm:$0xff]
        %v580 = vmul.f32 %v572, 0.95
        %v581 = vmul.f32 %v573, 0.95
        %v582 = vmul.f32 %v574, 0.95
        %v583 = vmul.f32 %v575, 0.95
        %v584 = vmul.f32 %v576, 0.95
        %v585 = vmul.f32 %v577, 0.95
        %v586 = vmul.f32 %v578, 0.95
        %v587 = vmul.f32 %v579, 0.95
        %v588 = vadd.f32 %v580, %v534
        %v589 = vadd.f32 %v581, %v539
        %v590 = vadd.f32 %v582, %v544
        %v591 = vadd.f32 %v583, %v549
        %v592 = vadd.f32 %v584, %v554
        %v593 = vadd.f32 %v585, %v559
        %v594 = vadd.f32 %v586, %v564
        %v595 = vadd.f32 %v587, %v569
        %vm596 = vcmp.gt.f32.partialorder %v572, 1.0
        %vm597 = vcmp.gt.f32.partialorder %v573, 1.0
        %vm598 = vcmp.gt.f32.partialorder %v574, 1.0
        %vm599 = vcmp.gt.f32.partialorder %v575, 1.0
        %vm600 = vcmp.gt.f32.partialorder %v576, 1.0
        %vm601 = vcmp.gt.f32.partialorder %v577, 1.0
        %vm602 = vcmp.gt.f32.partialorder %v578, 1.0
        %vm603 = vcmp.gt.f32.partialorder %v579, 1.0
        %v604 = vsel %vm596, 1.0, 0.0
        %v605 = vsel %vm597, 1.0, 0.0
        %v606 = vsel %vm598, 1.0, 0.0
        %v607 = vsel %vm599, 1.0, 0.0
        %v608 = vsel %vm600, 1.0, 0.0
        %v609 = vsel %vm601, 1.0, 0.0
        %v610 = vsel %vm602, 1.0, 0.0
        %v611 = vsel %vm603, 1.0, 0.0
        %v612 = vsub.f32 %v588, %v604
        %v613 = vsub.f32 %v589, %v605
        %v614 = vsub.f32 %v590, %v606
        %v615 = vsub.f32 %v591, %v607
        %v616 = vsub.f32 %v592, %v608
        %v617 = vsub.f32 %v593, %v609
        %v618 = vsub.f32 %v594, %v610
        %v619 = vsub.f32 %v595, %v611
        %vm620 = vcmp.gt.f32.partialorder %v612, 1.0
        %vm621 = vcmp.gt.f32.partialorder %v613, 1.0
        %vm622 = vcmp.gt.f32.partialorder %v614, 1.0
        %vm623 = vcmp.gt.f32.partialorder %v615, 1.0
        %vm624 = vcmp.gt.f32.partialorder %v616, 1.0
        %vm625 = vcmp.gt.f32.partialorder %v617, 1.0
        %vm626 = vcmp.gt.f32.partialorder %v618, 1.0
        %vm627 = vcmp.gt.f32.partialorder %v619, 1.0
        %v628 = vsel %vm620, 1.0, 0.0
        %v629 = vsel %vm621, 1.0, 0.0
        %v630 = vsel %vm622, 1.0, 0.0
        %v631 = vsel %vm623, 1.0, 0.0
        %v632 = vsel %vm624, 1.0, 0.0
        %v633 = vsel %vm625, 1.0, 0.0
        %v634 = vsel %vm626, 1.0, 0.0
        %v635 = vsel %vm627, 1.0, 0.0
        %v636 = vld [vmem:[%s3] sm:$0xff]
        %v637 = vld [vmem:[%s3 + $0x8] sm:$0xff]
        %v638 = vld [vmem:[%s3 + $0x10] sm:$0xff]
        %v639 = vld [vmem:[%s3 + $0x18] sm:$0xff]
        %v640 = vld [vmem:[%s3 + $0x20] sm:$0xff]
        %v641 = vld [vmem:[%s3 + $0x28] sm:$0xff]
        %v642 = vld [vmem:[%s3 + $0x30] sm:$0xff]
        %v643 = vld [vmem:[%s3 + $0x38] sm:$0xff]
        %v644 = vld [vmem:[%s3 + $0x40] sm:$0xff]
        %v645 = vld [vmem:[%s3 + $0x48] sm:$0xff]
        %v646 = vld [vmem:[%s3 + $0x50] sm:$0xff]
        %v647 = vld [vmem:[%s3 + $0x58] sm:$0xff]
        %v648 = vld [vmem:[%s3 + $0x60] sm:$0xff]
        %v649 = vld [vmem:[%s3 + $0x68] sm:$0xff]
        %v650 = vld [vmem:[%s3 + $0x70] sm:$0xff]
        %v651 = vld [vmem:[%s3 + $0x78] sm:$0xff]
        %v652 = vld [vmem:[%s4] sm:$0x1]
        %v654 = vlaneseq
        %v655 = vshrl.u32 %v654, 7
        %v656 = vsub.s32 0, %v655
        %v657 = vrot.slane %v652, %v656
        %659 = vmatprep.subr.mxu0 0.0
        %660 = vmatpush1.xpose.msra.mxu0 %v636
        %661 = vmatprep.subr.mxu0 0.0
        %662 = vmatpush1.xpose.msra.mxu0 %v637
        %663 = vmatprep.subr.mxu0 0.0
        %664 = vmatpush1.xpose.msra.mxu0 %v638
        %665 = vmatprep.subr.mxu0 0.0
        %666 = vmatpush1.xpose.msra.mxu0 %v639
        %667 = vmatprep.subr.mxu0 0.0
        %668 = vmatpush1.xpose.msra.mxu0 %v640
        %669 = vmatprep.subr.mxu0 0.0
        %670 = vmatpush1.xpose.msra.mxu0 %v641
        %671 = vmatprep.subr.mxu0 0.0
        %672 = vmatpush1.xpose.msra.mxu0 %v642
        %673 = vmatprep.subr.mxu0 0.0
        %674 = vmatpush1.xpose.msra.mxu0 %v643
        %675 = vmatprep.subr.mxu0 0.0
        %676 = vmatpush1.xpose.msra.mxu0 %v644
        %677 = vmatprep.subr.mxu0 0.0
        %678 = vmatpush1.xpose.msra.mxu0 %v645
        %679 = vmatprep.subr.mxu0 0.0
        %680 = vmatpush1.xpose.msra.mxu0 %v646
        %681 = vmatprep.subr.mxu0 0.0
        %682 = vmatpush1.xpose.msra.mxu0 %v647
        %683 = vmatprep.subr.mxu0 0.0
        %684 = vmatpush1.xpose.msra.mxu0 %v648
        %685 = vmatprep.subr.mxu0 0.0
        %686 = vmatpush1.xpose.msra.mxu0 %v649
        %687 = vmatprep.subr.mxu0 0.0
        %688 = vmatpush1.xpose.msra.mxu0 %v650
        %689 = vmatprep.subr.mxu0 0.0
        %690 = vmatpush1.xpose.msra.mxu0 %v651
        %691 = vmatprep.subr.mxu0 0.0
        %692 = vmatpush1.xpose.msra.mxu0 0.0
        %693 = vmatprep.subr.mxu0 0.0
        %694 = vmatpush1.xpose.msra.mxu0 0.0
        %695 = vmatprep.subr.mxu0 0.0
        %696 = vmatpush1.xpose.msra.mxu0 0.0
        %697 = vmatprep.subr.mxu0 0.0
        %698 = vmatpush1.xpose.msra.mxu0 0.0
        %699 = vmatprep.subr.mxu0 0.0
        %700 = vmatpush1.xpose.msra.mxu0 0.0
        %701 = vmatprep.subr.mxu0 0.0
        %702 = vmatpush1.xpose.msra.mxu0 0.0
        %703 = vmatprep.subr.mxu0 0.0
        %704 = vmatpush1.xpose.msra.mxu0 0.0
        %705 = vmatprep.subr.mxu0 0.0
        %706 = vmatpush1.xpose.msra.mxu0 0.0
        %707 = vmatprep.subr.mxu0 0.0
        %708 = vmatpush1.xpose.msra.mxu0 0.0
        %709 = vmatprep.subr.mxu0 0.0
        %710 = vmatpush1.xpose.msra.mxu0 0.0
        %711 = vmatprep.subr.mxu0 0.0
        %712 = vmatpush1.xpose.msra.mxu0 0.0
        %713 = vmatprep.subr.mxu0 0.0
        %714 = vmatpush1.xpose.msra.mxu0 0.0
        %715 = vmatprep.subr.mxu0 0.0
        %716 = vmatpush1.xpose.msra.mxu0 0.0
        %717 = vmatprep.subr.mxu0 0.0
        %718 = vmatpush1.xpose.msra.mxu0 0.0
        %719 = vmatprep.subr.mxu0 0.0
        %720 = vmatpush1.xpose.msra.mxu0 0.0
        %721 = vmatprep.subr.mxu0 0.0
        %722 = vmatpush1.xpose.msra.mxu0 0.0
        %723 = vmatprep.mubr.f32.mxu0 0.0
        %724 = vmatmul.mubr.f32.gmra.mrb[0].mxu0 %v628
        %v725 = vpop.f32.mrb[0].mxu0
        %v726 = vadd.f32 %v657, %v725
        %v727 = vpop.f32.mrb[0].mxu0
        %728 = vmatprep.mubr.f32.mxu0 0.0
        %729 = vmatmul.mubr.f32.gmra.mrb[0].mxu0 %v629
        %v730 = vpop.f32.mrb[0].mxu0
        %v731 = vadd.f32 %v657, %v730
        %v732 = vpop.f32.mrb[0].mxu0
        %733 = vmatprep.mubr.f32.mxu0 0.0
        %734 = vmatmul.mubr.f32.gmra.mrb[0].mxu0 %v630
        %v735 = vpop.f32.mrb[0].mxu0
        %v736 = vadd.f32 %v657, %v735
        %v737 = vpop.f32.mrb[0].mxu0
        %738 = vmatprep.mubr.f32.mxu0 0.0
        %739 = vmatmul.mubr.f32.gmra.mrb[0].mxu0 %v631
        %v740 = vpop.f32.mrb[0].mxu0
        %v741 = vadd.f32 %v657, %v740
        %v742 = vpop.f32.mrb[0].mxu0
        %743 = vmatprep.mubr.f32.mxu0 0.0
        %744 = vmatmul.mubr.f32.gmra.mrb[0].mxu0 %v632
        %v745 = vpop.f32.mrb[0].mxu0
        %v746 = vadd.f32 %v657, %v745
        %v747 = vpop.f32.mrb[0].mxu0
        %748 = vmatprep.mubr.f32.mxu0 0.0
        %749 = vmatmul.mubr.f32.gmra.mrb[0].mxu0 %v633
        %v750 = vpop.f32.mrb[0].mxu0
        %v751 = vadd.f32 %v657, %v750
        %v752 = vpop.f32.mrb[0].mxu0
        %753 = vmatprep.mubr.f32.mxu0 0.0
        %754 = vmatmul.mubr.f32.gmra.mrb[0].mxu0 %v634
        %v755 = vpop.f32.mrb[0].mxu0
        %v756 = vadd.f32 %v657, %v755
        %v757 = vpop.f32.mrb[0].mxu0
        %758 = vmatprep.mubr.f32.mxu0 0.0
        %759 = vmatmul.mubr.f32.gmra.mrb[0].mxu0 %v635
        %v760 = vpop.f32.mrb[0].mxu0
        %v761 = vadd.f32 %v657, %v760
        %v762 = vpop.f32.mrb[0].mxu0
        %763 = vdwg.mxu0
        %v764 = vld [vmem:[%s370] sm:$0xff]
        %v765 = vld [vmem:[%s370 + $0x8] sm:$0xff]
        %v766 = vld [vmem:[%s370 + $0x10] sm:$0xff]
        %v767 = vld [vmem:[%s370 + $0x18] sm:$0xff]
        %v768 = vld [vmem:[%s370 + $0x20] sm:$0xff]
        %v769 = vld [vmem:[%s370 + $0x28] sm:$0xff]
        %v770 = vld [vmem:[%s370 + $0x30] sm:$0xff]
        %v771 = vld [vmem:[%s370 + $0x38] sm:$0xff]
        %v772 = vmul.f32 %v764, 0.95
        %v773 = vmul.f32 %v765, 0.95
        %v774 = vmul.f32 %v766, 0.95
        %v775 = vmul.f32 %v767, 0.95
        %v776 = vmul.f32 %v768, 0.95
        %v777 = vmul.f32 %v769, 0.95
        %v778 = vmul.f32 %v770, 0.95
        %v779 = vmul.f32 %v771, 0.95
        %v780 = vadd.f32 %v772, %v726
        %v781 = vadd.f32 %v773, %v731
        %v782 = vadd.f32 %v774, %v736
        %v783 = vadd.f32 %v775, %v741
        %v784 = vadd.f32 %v776, %v746
        %v785 = vadd.f32 %v777, %v751
        %v786 = vadd.f32 %v778, %v756
        %v787 = vadd.f32 %v779, %v761
        %vm788 = vcmp.gt.f32.partialorder %v764, 1.0
        %vm789 = vcmp.gt.f32.partialorder %v765, 1.0
        %vm790 = vcmp.gt.f32.partialorder %v766, 1.0
        %vm791 = vcmp.gt.f32.partialorder %v767, 1.0
        %vm792 = vcmp.gt.f32.partialorder %v768, 1.0
        %vm793 = vcmp.gt.f32.partialorder %v769, 1.0
        %vm794 = vcmp.gt.f32.partialorder %v770, 1.0
        %vm795 = vcmp.gt.f32.partialorder %v771, 1.0
        %v796 = vsel %vm788, 1.0, 0.0
        %v797 = vsel %vm789, 1.0, 0.0
        %v798 = vsel %vm790, 1.0, 0.0
        %v799 = vsel %vm791, 1.0, 0.0
        %v800 = vsel %vm792, 1.0, 0.0
        %v801 = vsel %vm793, 1.0, 0.0
        %v802 = vsel %vm794, 1.0, 0.0
        %v803 = vsel %vm795, 1.0, 0.0
        %v804 = vsub.f32 %v780, %v796
        %v805 = vsub.f32 %v781, %v797
        %v806 = vsub.f32 %v782, %v798
        %v807 = vsub.f32 %v783, %v799
        %v808 = vsub.f32 %v784, %v800
        %v809 = vsub.f32 %v785, %v801
        %v810 = vsub.f32 %v786, %v802
        %v811 = vsub.f32 %v787, %v803
        %vm812 = vcmp.gt.f32.partialorder %v804, 1.0
        %vm813 = vcmp.gt.f32.partialorder %v805, 1.0
        %vm814 = vcmp.gt.f32.partialorder %v806, 1.0
        %vm815 = vcmp.gt.f32.partialorder %v807, 1.0
        %vm816 = vcmp.gt.f32.partialorder %v808, 1.0
        %vm817 = vcmp.gt.f32.partialorder %v809, 1.0
        %vm818 = vcmp.gt.f32.partialorder %v810, 1.0
        %vm819 = vcmp.gt.f32.partialorder %v811, 1.0
        %v820 = vsel %vm812, 1.0, 0.0
        %v821 = vsel %vm813, 1.0, 0.0
        %v822 = vsel %vm814, 1.0, 0.0
        %v823 = vsel %vm815, 1.0, 0.0
        %v824 = vsel %vm816, 1.0, 0.0
        %v825 = vsel %vm817, 1.0, 0.0
        %v826 = vsel %vm818, 1.0, 0.0
        %v827 = vsel %vm819, 1.0, 0.0
        %v828 = vadd.f32 %v820, %v436
        %v829 = vadd.f32 %v821, %v437
        %v830 = vadd.f32 %v822, %v438
        %v831 = vadd.f32 %v823, %v439
        %v832 = vadd.f32 %v824, %v440
        %v833 = vadd.f32 %v825, %v441
        %v834 = vadd.f32 %v826, %v442
        %v835 = vadd.f32 %v827, %v443
        %836 = vst [vmem:[%s410] sm:$0xff] %v828
        %837 = vst [vmem:[%s410 + $0x8] sm:$0xff] %v829
        %838 = vst [vmem:[%s410 + $0x10] sm:$0xff] %v830
        %839 = vst [vmem:[%s410 + $0x18] sm:$0xff] %v831
        %840 = vst [vmem:[%s410 + $0x20] sm:$0xff] %v832
        %841 = vst [vmem:[%s410 + $0x28] sm:$0xff] %v833
        %842 = vst [vmem:[%s410 + $0x30] sm:$0xff] %v834
        %843 = vst [vmem:[%s410 + $0x38] sm:$0xff] %v835
        %844 = vst [vmem:[%s417] sm:$0xff] %v612
        %845 = vst [vmem:[%s417 + $0x8] sm:$0xff] %v613
        %846 = vst [vmem:[%s417 + $0x10] sm:$0xff] %v614
        %847 = vst [vmem:[%s417 + $0x18] sm:$0xff] %v615
        %848 = vst [vmem:[%s417 + $0x20] sm:$0xff] %v616
        %849 = vst [vmem:[%s417 + $0x28] sm:$0xff] %v617
        %850 = vst [vmem:[%s417 + $0x30] sm:$0xff] %v618
        %851 = vst [vmem:[%s417 + $0x38] sm:$0xff] %v619
        %852 = vst [vmem:[%s424] sm:$0xff] %v804
        %853 = vst [vmem:[%s424 + $0x8] sm:$0xff] %v805
        %854 = vst [vmem:[%s424 + $0x10] sm:$0xff] %v806
        %855 = vst [vmem:[%s424 + $0x18] sm:$0xff] %v807
        %856 = vst [vmem:[%s424 + $0x20] sm:$0xff] %v808
        %857 = vst [vmem:[%s424 + $0x28] sm:$0xff] %v809
        %858 = vst [vmem:[%s424 + $0x30] sm:$0xff] %v810
        %859 = vst [vmem:[%s424 + $0x38] sm:$0xff] %v811
        %s860 = sand.u32 %s203, 1
        %s861 = scalar_lea.sflag [#allocation4], %s860
        %s862 = sand.u32 %s203, 1
        %s863 = smul.addr %s862, 64
        %s864 = scalar_lea.vmem [#allocation7], %s863
        %s865 = sand.u32 %s33, 1
        %s866 = scalar_lea.sflag [#allocation9], %s865
        %s867 = sand.u32 %s229, 1
        %s868 = smul.addr %s867, 64
        %s869 = scalar_lea.vmem [#allocation8], %s868
        %s870 = sand.u32 %s33, 1
        %s871 = scalar_lea.sflag [#allocation9], %s870
        %s872 = sand.u32 %s255, 1
        %s873 = smul.addr %s872, 64
        %s874 = scalar_lea.vmem [#allocation10], %s873
        // Predicated region
        $region57: #{spiking_residual_block.1} parent=47 // pred_check
          %p875 = pneg %p213
        $region58: #{spiking_residual_block.1} parent=47 // pred_check_branch
          %877 = sbr.rel (%p875) target = $region60
        $region59: #{spiking_residual_block.1} parent=47 // pred_region
          %s878 = smul.u32 8, %s33
          %s880 = ssub.s32 1024, 1024
          %881 = vsyncadd %s861, %s880
          %s882 = smul.addr %s878, 128
          %s883 = scalar_lea.hbm %s7, %s882
          %s884 = sshll.u32 %s864, 4
          %s885 = int_to_ptr.vmem [resolvable:$true] %s884
          %890 = dma.vmem_to_hbm [thread:$0]  %s885, 1024, %s883, %s861, 128, 128, 8
        $region60: #{spiking_residual_block.1} parent=47 // pred_fallthru
          _
        // Predicated region
        $region61: #{spiking_residual_block.1} parent=47 // pred_check
          %p891 = pneg %p239
        $region62: #{spiking_residual_block.1} parent=47 // pred_check_branch
          %893 = sbr.rel (%p891) target = $region64
        $region63: #{spiking_residual_block.1} parent=47 // pred_region
          %s894 = smul.u32 8, %s33
          %s896 = ssub.s32 1024, 1024
          %897 = vsyncadd %s866, %s896
          %s898 = smul.addr %s894, 128
          %s899 = scalar_lea.hbm %s8, %s898
          %s900 = sshll.u32 %s869, 4
          %s901 = int_to_ptr.vmem [resolvable:$true] %s900
          %906 = dma.vmem_to_hbm [thread:$0]  %s901, 1024, %s899, %s866, 128, 128, 8
        $region64: #{spiking_residual_block.1} parent=47 // pred_fallthru
          _
        // Predicated region
        $region65: #{spiking_residual_block.1} parent=47 // pred_check
          %p907 = pneg %p265
        $region66: #{spiking_residual_block.1} parent=47 // pred_check_branch
          %909 = sbr.rel (%p907) target = $region68
        $region67: #{spiking_residual_block.1} parent=47 // pred_region
          %s910 = smul.u32 8, %s33
          %s912 = ssub.s32 1024, 1024
          %913 = vsyncadd %s871, %s912
          %s914 = smul.addr %s910, 128
          %s915 = scalar_lea.hbm %s9, %s914
          %s916 = sshll.u32 %s874, 4
          %s917 = int_to_ptr.vmem [resolvable:$true] %s916
          %922 = dma.vmem_to_hbm [thread:$0]  %s917, 1024, %s915, %s871, 128, 128, 8
        $region68: #{spiking_residual_block.1} parent=47 // pred_fallthru
          _
      $region48: #{spiking_residual_block.1} parent=5 // pred_fallthru
        _
      %p923 = scmp.le.s32.totalorder 2, %s28
      // Predicated region
      $region69: #{spiking_residual_block.1} parent=5 // pred_check
        %p924 = pneg %p923
      $region70: #{spiking_residual_block.1} parent=5 // pred_check_branch
        %926 = sbr.rel (%p924) target = $region72
      $region71: #{spiking_residual_block.1} parent=5 // pred_region
        %s927 = ssub.s32 %s28, 2
        // Predicated region
        $region73: #{spiking_residual_block.1} parent=71 // pred_check
          %p928 = pneg %p219
        $region74: #{spiking_residual_block.1} parent=71 // pred_check_branch
          %930 = sbr.rel (%p928) target = $region76
        $region75: #{spiking_residual_block.1} parent=71 // pred_region
          %s931 = sand.u32 %s204, 1
          %s932 = scalar_lea.sflag [#allocation4], %s931
          %s933 = sand.u32 %s204, 1
          %s934 = smul.addr %s933, 64
          %s935 = scalar_lea.vmem [#allocation7], %s934
          %936 = dma.done %s932, 1024
        $region76: #{spiking_residual_block.1} parent=71 // pred_fallthru
          _
        // Predicated region
        $region77: #{spiking_residual_block.1} parent=71 // pred_check
          %p937 = pneg %p245
        $region78: #{spiking_residual_block.1} parent=71 // pred_check_branch
          %939 = sbr.rel (%p937) target = $region80
        $region79: #{spiking_residual_block.1} parent=71 // pred_region
          %s940 = sand.u32 %s34, 1
          %s941 = scalar_lea.sflag [#allocation9], %s940
          %s942 = sand.u32 %s230, 1
          %s943 = smul.addr %s942, 64
          %s944 = scalar_lea.vmem [#allocation8], %s943
          %945 = dma.done %s941, 1024
        $region80: #{spiking_residual_block.1} parent=71 // pred_fallthru
          _
        // Predicated region
        $region81: #{spiking_residual_block.1} parent=71 // pred_check
          %p946 = pneg %p271
        $region82: #{spiking_residual_block.1} parent=71 // pred_check_branch
          %948 = sbr.rel (%p946) target = $region84
        $region83: #{spiking_residual_block.1} parent=71 // pred_region
          %s949 = sand.u32 %s34, 1
          %s950 = scalar_lea.sflag [#allocation9], %s949
          %s951 = sand.u32 %s256, 1
          %s952 = smul.addr %s951, 64
          %s953 = scalar_lea.vmem [#allocation10], %s952
          %954 = dma.done %s950, 1024
        $region84: #{spiking_residual_block.1} parent=71 // pred_fallthru
          _
      $region72: #{spiking_residual_block.1} parent=5 // pred_fallthru
        _
    $region6: #{spiking_residual_block.1} parent=1 // loop_footer
      %s32 = sadd.s32 1, %s28
    $region7: #{spiking_residual_block.1} parent=1 // loop_footer_branch
      %27 = sbr.rel target = $region3
    $region8: #{spiking_residual_block.1} parent=1 // loop_exit
      _
    %955 = vsyncpa [#allocation3], 1
    %s956 = scalar_lea.sflag [#allocation3], 1
    %957 = vsyncpa %s956, 1
    %958 = vsyncpa [#allocation6], 1
    %s959 = scalar_lea.sflag [#allocation6], 1
    %960 = vsyncpa %s959, 1
    %961 = vsyncpa [#allocation4], 1
    %s962 = scalar_lea.sflag [#allocation4], 1
    %963 = vsyncpa %s962, 1
    %964 = vsyncpa [#allocation9], 1
    %s965 = scalar_lea.sflag [#allocation9], 1
    %966 = vsyncpa %s965, 1

</llo_original>
